<compile_context>
chip_gen: v7x
topology: tpu7x:2x2x1
jax: 0.10.0
libtpu: 0.0.40
codegen_flags: <defaults>
</compile_context>

<pallas_src>
import jax
import jax.numpy as jnp
from jax.experimental import pallas as pl
from jax.experimental.pallas import tpu as pltpu


def _pos_embed_add_kernel(x_ref, pos_ref, o_ref):
    # x_ref:   (TB, N, D) tile of the input tokens
    # pos_ref: (1,  N, D) full positional table (cls ++ patches); broadcasts over TB
    # o_ref:   (TB, N, D)
    o_ref[...] = x_ref[...] + pos_ref[...]


def _round_up(x, m):
    return ((x + m - 1) // m) * m


def _chip_budget():
    """Return (vmem_limit_bytes, vmem_budget_bytes, num_tensorcores)."""
    try:
        cap = int(pltpu.get_tpu_info().vmem_capacity_bytes)
    except Exception:
        # Conservative fallback: assume the smallest (v7x-like, 64 MiB/TC) VMEM.
        cap = 64 * 1024 * 1024
    if cap <= 96 * 1024 * 1024:
        # v7x-like: 64 MiB per TensorCore, 2 TCs/chip -> stay well under the
        # per-core capacity and split work evenly across both cores.
        return 48 * 1024 * 1024, 40 * 1024 * 1024, 2
    # v5e / v6e: single TensorCore, 128 MiB physical VMEM -> bigger tiles,
    # no forced grid split.
    return 96 * 1024 * 1024, 80 * 1024 * 1024, 1


def positional_embedding_2d(x, cls_pos_embed, patch_pos_embed, *,
                            batch_tile=None, donate_x=False):
    """x: (B, N, D); cls_pos_embed: (1, 1, D); patch_pos_embed: (1, H*W, D)."""
    B, N, D = x.shape
    HW = patch_pos_embed.shape[1]
    assert N == 1 + HW, f"expected N == 1 + H*W, got N={N}, HW={HW}"

    # Full positional table built once outside the kernel (one-time O(N*D)).
    pos = jnp.concatenate(
        [cls_pos_embed.astype(x.dtype), patch_pos_embed.astype(x.dtype)], axis=1
    )  # (1, N, D)

    itemsize = jnp.dtype(x.dtype).itemsize
    # Sublane packing of the second-to-last dim (f32: 8, bf16: 16, int8/fp8: 32).
    sub = {4: 8, 2: 16, 1: 32}.get(itemsize, 8)
    n_pad = _round_up(N, sub)
    d_pad = _round_up(D, 128)
    # One batch row of a tile, as actually laid out in VMEM (padded).
    row_bytes = n_pad * d_pad * itemsize
    # pos block: same padded footprint, and the pipeline double-buffers it
    # even though its block index is constant -> budget 2x.
    pos_bytes = 2 * row_bytes

    vmem_limit, vmem_budget, num_tc = _chip_budget()

    if batch_tile is None:
        # Double-buffered x tile + double-buffered out tile + pos table.
        tb_max = max(1, (vmem_budget - pos_bytes) // (4 * row_bytes))
        tb_max = min(tb_max, B)
        if num_tc > 1 and B >= num_tc:
            # Balanced split across TensorCores: round the number of grid
            # steps up to a multiple of num_tc so both cores get equal work.
            steps = pl.cdiv(B, tb_max)
            steps = _round_up(max(steps, num_tc), num_tc)
            batch_tile = pl.cdiv(B, steps)
        else:
            batch_tile = tb_max
    TB = max(1, min(int(batch_tile), B))
    grid = (pl.cdiv(B, TB),)

    cost = pl.CostEstimate(
        flops=B * N * D,
        transcendentals=0,
        bytes_accessed=(2 * B + 1) * N * D * itemsize,
    )

    extra = {}
    if donate_x:
        # Alias x with the output (halves HBM footprint; caller must donate x).
        extra["input_output_aliases"] = {0: 0}

    out = pl.pallas_call(
        _pos_embed_add_kernel,
        out_shape=jax.ShapeDtypeStruct((B, N, D), x.dtype),
        grid=grid,
        in_specs=[
            pl.BlockSpec((TB, N, D), lambda b: (b, 0, 0)),  # x: TB batch rows/step
            pl.BlockSpec((1, N, D), lambda b: (0, 0, 0)),   # pos (constant index)
        ],
        out_specs=pl.BlockSpec((TB, N, D), lambda b: (b, 0, 0)),
        compiler_params=pltpu.CompilerParams(
            dimension_semantics=("parallel",),
            vmem_limit_bytes=vmem_limit,
        ),
        cost_estimate=cost,
        **extra,
    )(x, pos)

    return out


if __name__ == "__main__":
    # Small shapes consistent with the module: height=4, width=4, embed_dim=32
    height, width, embed_dim = 4, 4, 32
    batch = 2
    seq_len = 1 + height * width  # 17

    key = jax.random.PRNGKey(0)
    k_x, k_cls, k_patch = jax.random.split(key, 3)

    # Deterministic synthetic parameters (matching nn.Parameter init shapes).
    cls_pos_embed = jax.random.normal(k_cls, (1, 1, embed_dim), jnp.float32) * 0.02
    patch_pos_embed = (
        jax.random.normal(k_patch, (1, height * width, embed_dim), jnp.float32) * 0.02
    )
    x = jax.random.normal(k_x, (batch, seq_len, embed_dim), jnp.float32)

    out = positional_embedding_2d(x, cls_pos_embed, patch_pos_embed)
    out = jax.block_until_ready(out)

    # Pure-JAX reference (same semantics as the PyTorch forward).
    ref = jnp.concatenate(
        [x[:, :1] + cls_pos_embed, x[:, 1:] + patch_pos_embed], axis=1
    )
    assert out.shape == (batch, seq_len, embed_dim)
    assert jnp.allclose(out, ref, atol=1e-6, rtol=1e-6)

    print("KERNEL_OK")
</pallas_src>

<mosaic_0001>
module attributes {stable_mosaic.version = 11 : i64} {
  func.func @_pos_embed_add_kernel(%arg0: i32, %arg1: memref<1x17x32xf32, #tpu.memory_space<vmem>>, %arg2: memref<1x17x32xf32, #tpu.memory_space<vmem>>, %arg3: memref<1x17x32xf32, #tpu.memory_space<vmem>>) attributes {dimension_semantics = [#tpu.dimension_semantics<parallel>], iteration_bounds = array<i64: 2>, scalar_prefetch = 0 : i64, scratch_operands = 0 : i64, tpu.core_type = #tpu.core_type<tc>, window_params = [{transform_indices = @transform_0, window_bounds = array<i64: 1, 17, 32>}, {pipeline_mode = #tpu.pipeline_mode<synchronous>, transform_indices = @transform_1, window_bounds = array<i64: 1, 17, 32>}, {transform_indices = @transform_2, window_bounds = array<i64: 1, 17, 32>}]} {
    %c0 = arith.constant 0 : index
    %c0_0 = arith.constant 0 : index
    %c0_1 = arith.constant 0 : index
    %0 = vector.load %arg1[%c0, %c0_0, %c0_1] : memref<1x17x32xf32, #tpu.memory_space<vmem>>, vector<1x17x32xf32>
    %c0_2 = arith.constant 0 : index
    %c0_3 = arith.constant 0 : index
    %c0_4 = arith.constant 0 : index
    %1 = vector.load %arg2[%c0_2, %c0_3, %c0_4] : memref<1x17x32xf32, #tpu.memory_space<vmem>>, vector<1x17x32xf32>
    %2 = arith.addf %0, %1 : vector<1x17x32xf32>
    %c0_5 = arith.constant 0 : index
    %c0_6 = arith.constant 0 : index
    %c0_7 = arith.constant 0 : index
    %3 = vector.load %arg3[%c0_5, %c0_6, %c0_7] : memref<1x17x32xf32, #tpu.memory_space<vmem>>, vector<1x17x32xf32>
    tpu.vector_store %arg3[%c0_5, %c0_6, %c0_7], %2 {strides = array<i32>} : memref<1x17x32xf32, #tpu.memory_space<vmem>>, vector<1x17x32xf32>,
    return
  }
  func.func @transform_0(%arg0: i32) -> (i32, i32, i32) {
    %c0_i32 = arith.constant 0 : i32
    %c0_i32_0 = arith.constant 0 : i32
    %c0_i32_1 = arith.constant 0 : i32
    return %arg0, %c0_i32, %c0_i32_0 : i32, i32, i32
  }
  func.func @transform_1(%arg0: i32) -> (i32, i32, i32) {
    %c0_i32 = arith.constant 0 : i32
    %c0_i32_0 = arith.constant 0 : i32
    %c0_i32_1 = arith.constant 0 : i32
    %c0_i32_2 = arith.constant 0 : i32
    return %c0_i32, %c0_i32_0, %c0_i32_1 : i32, i32, i32
  }
  func.func @transform_2(%arg0: i32) -> (i32, i32, i32) {
    %c0_i32 = arith.constant 0 : i32
    %c0_i32_0 = arith.constant 0 : i32
    %c0_i32_1 = arith.constant 0 : i32
    return %arg0, %c0_i32, %c0_i32_0 : i32, i32, i32
  }
}

</mosaic_0001>

<llo_original>
// kernel: tpu_custom_call.1
$region0: #{tpu_custom_call.1}
  #allocation0 [shape = 'u32[]', space=smem, size = 0x4, offset = 0x4, fixed_abs, tag = 'smem constant byte address 0x4 - core index']
  #allocation1 [shape = 'u32[144,128]{1,0:T(1,128)}', space=vmem, size = 0x12000, scoped, tag = 'internal scratch']
  %s0 = inlined_call_operand.vmem [shape: f32[2,17,32], index: 0, kind: input, shape index: {}]
  %s1 = inlined_call_operand.vmem [shape: f32[1,17,32], index: 1, kind: input, shape index: {}]
  %s2 = inlined_call_operand.vmem [shape: f32[2,17,32], index: 2, kind: output, shape index: {}]
  %s3 = sld [smem:[#allocation0]]
  $region41: #{tpu_custom_call.1} parent=0
    _
  %s5 = ssub.s32 1, %s3
  %s6 = scalar_select 0, %s5, %s3
  loop: start=0, step=1, limit=4
  $region2: #{tpu_custom_call.1} parent=0 // loop_pre_header
    _
  $region3: #{tpu_custom_call.1} parent=0 // loop_header
    %s8 = sphi 0, %s12
    %p9 = scmp.ge.s32.totalorder %s8, 4
    %s18 = sphi 0, %s20
    %s21 = sphi 0, %s18
    %s22 = sphi 0, %s21
    %s38 = sphi 0, %s22
    %s42 = sphi 0, %s42
    %s44 = sphi 0, %s42
    %s45 = sphi 0, %s44
    %s59 = sphi 0, %s45
    %s65 = sphi 0, %s67
    %s68 = sphi 0, %s65
    %s69 = sphi 0, %s68
    %s85 = sphi 0, %s69
  $region4: #{tpu_custom_call.1} parent=0 // loop_header_branch
    %11 = sbr.rel (%p9) target = $region8
  $region5: #{tpu_custom_call.1} parent=0 // loop_body
    %s13 = ssub.s32 %s8, 1
    %s14 = ssub.s32 %s8, 2
    %s15 = sadd.s32 %s8, 1
    %s16 = ssub.s32 %s8, %s15
    %p17 = scmp.eq.s32.totalorder %s16, 0
    %s19 = sadd.s32 %s18, 1
    %s20 = scalar_select %p17, %s18, %s19
    %p23 = pneg %p17
    %p24 = scmp.eq.s32.totalorder %s8, 1
    %p25 = por %p23, %p24
    %p26 = scmp.ne.s32.totalorder %s18, %s21
    %p27 = scmp.eq.s32.totalorder %s8, 0
    %p28 = por %p26, %p27
    %p29 = scmp.ne.s32.totalorder %s18, %s21
    %p30 = scmp.eq.s32.totalorder %s13, 1
    %p31 = por %p29, %p30
    %p32 = scmp.ne.s32.totalorder %s21, %s22
    %p33 = scmp.eq.s32.totalorder %s13, 0
    %p34 = por %p32, %p33
    %p35 = scmp.ne.s32.totalorder %s21, %s22
    %p36 = scmp.eq.s32.totalorder %s14, 1
    %p37 = por %p35, %p36
    %p39 = scmp.ne.s32.totalorder %s22, %s38
    %p40 = scmp.eq.s32.totalorder %s14, 0
    %p41 = por %p39, %p40
    %s43 = sadd.s32 %s42, 1
    %p46 = scmp.eq.s32.totalorder %s8, 1
    %p47 = scmp.ne.s32.totalorder %s42, %s44
    %p48 = scmp.eq.s32.totalorder %s8, 0
    %p49 = por %p47, %p48
    %p50 = scmp.ne.s32.totalorder %s42, %s44
    %p51 = scmp.eq.s32.totalorder %s13, 1
    %p52 = por %p50, %p51
    %p53 = scmp.ne.s32.totalorder %s44, %s45
    %p54 = scmp.eq.s32.totalorder %s13, 0
    %p55 = por %p53, %p54
    %p56 = scmp.ne.s32.totalorder %s44, %s45
    %p57 = scmp.eq.s32.totalorder %s14, 1
    %p58 = por %p56, %p57
    %p60 = scmp.ne.s32.totalorder %s45, %s59
    %p61 = scmp.eq.s32.totalorder %s14, 0
    %p62 = por %p60, %p61
    %s63 = ssub.s32 %s8, %s15
    %p64 = scmp.eq.s32.totalorder %s63, 0
    %s66 = sadd.s32 %s65, 1
    %s67 = scalar_select %p64, %s65, %s66
    %p70 = pneg %p64
    %p71 = scmp.eq.s32.totalorder %s8, 1
    %p72 = por %p70, %p71
    %p73 = scmp.ne.s32.totalorder %s65, %s68
    %p74 = scmp.eq.s32.totalorder %s8, 0
    %p75 = por %p73, %p74
    %p76 = scmp.ne.s32.totalorder %s65, %s68
    %p77 = scmp.eq.s32.totalorder %s13, 1
    %p78 = por %p76, %p77
    %p79 = scmp.ne.s32.totalorder %s68, %s69
    %p80 = scmp.eq.s32.totalorder %s13, 0
    %p81 = por %p79, %p80
    %p82 = scmp.ne.s32.totalorder %s68, %s69
    %p83 = scmp.eq.s32.totalorder %s14, 1
    %p84 = por %p82, %p83
    %p86 = scmp.ne.s32.totalorder %s69, %s85
    %p87 = scmp.eq.s32.totalorder %s14, 0
    %p88 = por %p86, %p87
    %p89 = scmp.le.s32.totalorder 1, %s8
    %p90 = scmp.lt.s32.totalorder %s8, 3
    %p91 = pnand %p89, %p90
    %p92 = pneg %p91
    // Predicated region
    $region9: #{tpu_custom_call.1} parent=5 // pred_check
      _
    $region10: #{tpu_custom_call.1} parent=5 // pred_check_branch
      %94 = sbr.rel (%p91) target = $region12
    $region11: #{tpu_custom_call.1} parent=5 // pred_region
      %s95 = ssub.s32 %s8, 1
      // Predicated region
      $region13: #{tpu_custom_call.1} parent=11 // pred_check
        %p96 = pneg %p55
      $region14: #{tpu_custom_call.1} parent=11 // pred_check_branch
        %98 = sbr.rel (%p96) target = $region16
      $region15: #{tpu_custom_call.1} parent=11 // pred_region
        _
      $region16: #{tpu_custom_call.1} parent=11 // pred_fallthru
        _
    $region12: #{tpu_custom_call.1} parent=5 // pred_fallthru
      _
    %p99 = scmp.lt.s32.totalorder %s8, 2
    // Predicated region
    $region17: #{tpu_custom_call.1} parent=5 // pred_check
      %p100 = pneg %p99
    $region18: #{tpu_custom_call.1} parent=5 // pred_check_branch
      %102 = sbr.rel (%p100) target = $region20
    $region19: #{tpu_custom_call.1} parent=5 // pred_region
      // Predicated region
      $region21: #{tpu_custom_call.1} parent=19 // pred_check
        %p103 = pneg %p28
      $region22: #{tpu_custom_call.1} parent=19 // pred_check_branch
        %105 = sbr.rel (%p103) target = $region24
      $region23: #{tpu_custom_call.1} parent=19 // pred_region
        %p106 = scmp.lt.s32.totalorder %s8, 1
        %s107 = scalar_select %p106, %s8, 1
        %s108 = smul.addr %s107, 3
        %s109 = smul.addr %s108, 8
        %s110 = scalar_lea.vmem %s0, %s109
      $region24: #{tpu_custom_call.1} parent=19 // pred_fallthru
        _
    $region20: #{tpu_custom_call.1} parent=5 // pred_fallthru
      _
    %p111 = scmp.le.s32.totalorder 1, %s8
    %p112 = scmp.lt.s32.totalorder %s8, 3
    %p113 = pnand %p111, %p112
    %p114 = pneg %p113
    // Predicated region
    $region25: #{tpu_custom_call.1} parent=5 // pred_check
      _
    $region26: #{tpu_custom_call.1} parent=5 // pred_check_branch
      %116 = sbr.rel (%p113) target = $region28
    $region27: #{tpu_custom_call.1} parent=5 // pred_region
      %s117 = ssub.s32 %s8, 1
      %p118 = scmp.lt.s32.totalorder %s13, 1
      %s119 = scalar_select %p118, %s13, 1
      %s120 = smul.addr %s119, 3
      %s121 = smul.addr %s120, 8
      %s122 = scalar_lea.vmem %s0, %s121
      %p123 = pneg %p34
      %p124 = pneg %p31
      %p125 = pneg %p55
      %p126 = pneg %p52
      %p127 = pneg %p81
      %p128 = pneg %p78
      %p129 = scmp.lt.s32.totalorder %s13, 1
      %s130 = scalar_select %p129, %s13, 1
      %s131 = smul.addr %s130, 3
      %s132 = smul.addr %s131, 8
      %s133 = scalar_lea.vmem %s2, %s132
      %p134 = scmp.lt.s32.totalorder %s13, 1
      %s135 = scalar_select %p134, %s13, 1
      %s136 = smul.addr %s135, 3
      %s137 = smul.addr %s136, 8
      %s138 = scalar_lea.vmem %s0, %s137
      %p139 = scmp.lt.s32.totalorder %s13, 1
      %s140 = scalar_select %p139, %s13, 1
      %s141 = smul.addr %s140, 3
      %s142 = smul.addr %s141, 8
      %s143 = scalar_lea.vmem %s2, %s142
      %v144 = vld [vmem:[%s138] sm:$0xff]
      %v145 = vld [vmem:[%s138 + $0x8] sm:$0xff]
      %v146 = vld [vmem:[%s138 + $0x10] sm:$0x1]
      %v147 = vld [vmem:[%s1] sm:$0xff]
      %v148 = vld [vmem:[%s1 + $0x8] sm:$0xff]
      %v149 = vld [vmem:[%s1 + $0x10] sm:$0x1]
      %v150 = vadd.f32 %v144, %v147
      %v151 = vadd.f32 %v145, %v148
      %v152 = vadd.f32 %v146, %v149
      %vm153 = vcmask 261120
      %154 = vst.msk [vmem:[%s143] sm:$0xff] %vm153, %v150
      %155 = vst.msk [vmem:[%s143 + $0x8] sm:$0xff] %vm153, %v151
      %vm156 = vcmask 253952
      %157 = vst.msk [vmem:[%s143 + $0x10] sm:$0x1] %vm156, %v152
      %p158 = scmp.lt.s32.totalorder %s13, 1
      %s159 = scalar_select %p158, %s13, 1
      %s160 = smul.addr %s159, 3
      %s161 = smul.addr %s160, 8
      %s162 = scalar_lea.vmem %s2, %s161
      // Predicated region
      $region29: #{tpu_custom_call.1} parent=27 // pred_check
        %p163 = pneg %p78
      $region30: #{tpu_custom_call.1} parent=27 // pred_check_branch
        %165 = sbr.rel (%p163) target = $region32
      $region31: #{tpu_custom_call.1} parent=27 // pred_region
        _
      $region32: #{tpu_custom_call.1} parent=27 // pred_fallthru
        _
    $region28: #{tpu_custom_call.1} parent=5 // pred_fallthru
      _
    %p166 = scmp.le.s32.totalorder 2, %s8
    // Predicated region
    $region33: #{tpu_custom_call.1} parent=5 // pred_check
      %p167 = pneg %p166
    $region34: #{tpu_custom_call.1} parent=5 // pred_check_branch
      %169 = sbr.rel (%p167) target = $region36
    $region35: #{tpu_custom_call.1} parent=5 // pred_region
      %s170 = ssub.s32 %s8, 2
      // Predicated region
      $region37: #{tpu_custom_call.1} parent=35 // pred_check
        %p171 = pneg %p84
      $region38: #{tpu_custom_call.1} parent=35 // pred_check_branch
        %173 = sbr.rel (%p171) target = $region40
      $region39: #{tpu_custom_call.1} parent=35 // pred_region
        %p174 = scmp.lt.s32.totalorder %s14, 1
        %s175 = scalar_select %p174, %s14, 1
        %s176 = smul.addr %s175, 3
        %s177 = smul.addr %s176, 8
        %s178 = scalar_lea.vmem %s2, %s177
      $region40: #{tpu_custom_call.1} parent=35 // pred_fallthru
        _
    $region36: #{tpu_custom_call.1} parent=5 // pred_fallthru
      _
  $region6: #{tpu_custom_call.1} parent=0 // loop_footer
    %s12 = sadd.s32 1, %s8
  $region7: #{tpu_custom_call.1} parent=0 // loop_footer_branch
    %7 = sbr.rel target = $region3
  $region8: #{tpu_custom_call.1} parent=0 // loop_exit
    _

</llo_original>
